<compile_context>
chip_gen: v5e
topology: v5e:2x2
jax: 0.10.0
libtpu: 0.0.40
codegen_flags: <defaults>
</compile_context>

<pallas_src>
import jax
import jax.numpy as jnp
from jax.experimental import pallas as pl
from jax.experimental.pallas import tpu as pltpu


def _critic_kernel(s_ref, a_ref, w1s_ref, w1a_ref, b1_ref,
                   w2_ref, b2_ref, w3t_ref, b3_ref, o_ref):
    # Layer 1: split-W1 form of Linear(concat(s, a)) -> tanh, f32 accumulate.
    h = (jnp.dot(s_ref[...], w1s_ref[...], preferred_element_type=jnp.float32)
         + jnp.dot(a_ref[...], w1a_ref[...], preferred_element_type=jnp.float32)
         + b1_ref[...])
    h = jnp.tanh(h)                                   # f32 tanh (v5e-safe)
    # Layer 2: Linear -> tanh (operands cast to weight dtype, f32 accumulate).
    h = jnp.dot(h.astype(w2_ref.dtype), w2_ref[...],
                preferred_element_type=jnp.float32) + b2_ref[...]
    h = jnp.tanh(h)
    # Output layer (N=1): VPU multiply + XLU lane reduction instead of an MXU
    # matmul that would use a single result column.
    o = jnp.sum(h * w3t_ref[...], axis=-1, keepdims=True) + b3_ref[...]
    o_ref[...] = o.astype(o_ref.dtype)


def deep_critic_forward(s, a, params, *, tile_b=512, use_bf16=False):
    """DeepCritic.forward: layers(cat((s, a), dim=1)) -> [B, 1]."""
    if a is None:
        raise ValueError('`a` cannot be None')
    B, S = s.shape
    A = a.shape[1]
    w1, b1, w2, b2, w3, b3 = params
    H1 = w1.shape[1]
    H2 = w2.shape[1]

    # Split W1 so the concat never materializes; pre-transpose W3 to a row.
    w1s, w1a = w1[:S], w1[S:]
    w3t = jnp.transpose(w3)                    # (1, H2), stays f32
    b1 = b1.astype(jnp.float32)
    b2 = b2.astype(jnp.float32)
    b3 = b3.astype(jnp.float32)

    # Matmul-operand dtype (bf16 halves HBM read bytes for the dominant input;
    # accumulation / tanh / bias / output remain f32 inside the kernel).
    cdt = jnp.bfloat16 if use_bf16 else jnp.float32
    s_in = s.astype(cdt)
    a_in = a.astype(cdt)
    w1s = w1s.astype(cdt)
    w1a = w1a.astype(cdt)
    w2c = w2.astype(cdt)

    # Batch tile: biggest tile up to `tile_b` (multiple of 8), or all of B.
    TB = B if B <= tile_b else tile_b
    grid = (pl.cdiv(B, TB),)

    # Explicit VMEM budget: double-buffered s/a tiles + resident params +
    # f32 intermediates + output, with 2x headroom; clamp to [4 MiB, 32 MiB]
    # so the same sizing works on v7x (64 MiB physical) and v5e/v6e (128 MiB).
    itemsize = 2 if use_bf16 else 4
    est = (2 * TB * (S + A) * itemsize
           + ((S + A) * H1 + H1 * H2) * itemsize
           + (H1 + 2 * H2 + 1) * 4
           + 4 * TB * (H1 + H2) * 4
           + 2 * TB * 4)
    vmem_limit = int(min(max(2 * est, 4 << 20), 32 << 20))

    def resident(arr):
        # Constant block index -> param stays resident in VMEM across the grid.
        return pl.BlockSpec(arr.shape, lambda i: (0,) * arr.ndim)

    return pl.pallas_call(
        _critic_kernel,
        out_shape=jax.ShapeDtypeStruct((B, 1), jnp.float32),
        grid_spec=pltpu.PrefetchScalarGridSpec(
            num_scalar_prefetch=0,
            grid=grid,
            in_specs=[
                pl.BlockSpec((TB, S), lambda i: (i, 0)),   # s tile (pipelined)
                pl.BlockSpec((TB, A), lambda i: (i, 0)),   # a tile (pipelined)
                resident(w1s), resident(w1a), resident(b1),
                resident(w2c), resident(b2),
                resident(w3t), resident(b3),
            ],
            out_specs=pl.BlockSpec((TB, 1), lambda i: (i, 0)),
        ),
        compiler_params=pltpu.CompilerParams(
            dimension_semantics=("parallel",),     # shards batch over v7x's 2 TCs
            vmem_limit_bytes=vmem_limit,
        ),
    )(s_in, a_in, w1s, w1a, b1, w2c, b2, w3t, b3)


def init_params(key, in_dim, hidden_dims, out_dim=1):
    """Deterministic synthetic init for the MLP (Linear weights + biases)."""
    dims = [in_dim] + list(hidden_dims) + [out_dim]
    params = []
    for i in range(len(dims) - 1):
        key, kw, kb = jax.random.split(key, 3)
        fan_in = dims[i]
        bound = 1.0 / jnp.sqrt(jnp.float32(fan_in))
        w = jax.random.uniform(kw, (dims[i], dims[i + 1]), jnp.float32,
                               minval=-bound, maxval=bound)
        b = jax.random.uniform(kb, (1, dims[i + 1]), jnp.float32,
                               minval=-bound, maxval=bound)
        params += [w, b]
    return tuple(params)


def reference_forward(s, a, params):
    """Pure-JAX reference of the same forward pass (f32)."""
    x = jnp.concatenate((s, a), axis=1)
    w1, b1, w2, b2, w3, b3 = params
    h = jnp.tanh(x @ w1 + b1)
    h = jnp.tanh(h @ w2 + b2)
    return h @ w3 + b3


if __name__ == "__main__":
    # Small shapes consistent with the module: continuous state/action vectors.
    B = 8          # batch
    S = 16         # state_dim (flattened)
    A = 16         # action_dim (flattened)
    HIDDEN = (32, 32)

    key = jax.random.PRNGKey(0)
    k_s, k_a, k_p = jax.random.split(key, 3)
    s = jax.random.normal(k_s, (B, S), jnp.float32)
    a = jax.random.normal(k_a, (B, A), jnp.float32)
    params = init_params(k_p, S + A, HIDDEN, out_dim=1)

    q_ref = reference_forward(s, a, params)

    # f32 path: exact match with the PyTorch-equivalent reference.
    q = deep_critic_forward(s, a, params, use_bf16=False)
    q = jax.block_until_ready(q)
    assert q.shape == (B, 1), q.shape
    assert jnp.allclose(q, q_ref, atol=1e-5, rtol=1e-5), (q, q_ref)

    # bf16 matmul-operand path (v6e/v7x bandwidth optimization): looser check.
    q_bf16 = deep_critic_forward(s, a, params, use_bf16=True)
    q_bf16 = jax.block_until_ready(q_bf16)
    assert q_bf16.shape == (B, 1), q_bf16.shape
    assert jnp.allclose(q_bf16, q_ref, atol=5e-2, rtol=5e-2), (q_bf16, q_ref)

    print("KERNEL_OK")
</pallas_src>

<mosaic_0001>
module attributes {stable_mosaic.version = 11 : i64} {
  func.func @_critic_kernel(%arg0: i32, %arg1: memref<8x16xf32, #tpu.memory_space<vmem>>, %arg2: memref<8x16xf32, #tpu.memory_space<vmem>>, %arg3: memref<16x32xf32, #tpu.memory_space<vmem>>, %arg4: memref<16x32xf32, #tpu.memory_space<vmem>>, %arg5: memref<1x32xf32, #tpu.memory_space<vmem>>, %arg6: memref<32x32xf32, #tpu.memory_space<vmem>>, %arg7: memref<1x32xf32, #tpu.memory_space<vmem>>, %arg8: memref<1x32xf32, #tpu.memory_space<vmem>>, %arg9: memref<1x1xf32, #tpu.memory_space<vmem>>, %arg10: memref<8x1xf32, #tpu.memory_space<vmem>>) attributes {dimension_semantics = [#tpu.dimension_semantics<parallel>], iteration_bounds = array<i64: 1>, scalar_prefetch = 0 : i64, scratch_operands = 0 : i64, tpu.core_type = #tpu.core_type<tc>, window_params = [{transform_indices = @transform_0, window_bounds = array<i64: 8, 16>}, {transform_indices = @transform_1, window_bounds = array<i64: 8, 16>}, {pipeline_mode = #tpu.pipeline_mode<synchronous>, transform_indices = @transform_2, window_bounds = array<i64: 16, 32>}, {pipeline_mode = #tpu.pipeline_mode<synchronous>, transform_indices = @transform_3, window_bounds = array<i64: 16, 32>}, {pipeline_mode = #tpu.pipeline_mode<synchronous>, transform_indices = @transform_4, window_bounds = array<i64: 1, 32>}, {pipeline_mode = #tpu.pipeline_mode<synchronous>, transform_indices = @transform_5, window_bounds = array<i64: 32, 32>}, {pipeline_mode = #tpu.pipeline_mode<synchronous>, transform_indices = @transform_6, window_bounds = array<i64: 1, 32>}, {pipeline_mode = #tpu.pipeline_mode<synchronous>, transform_indices = @transform_7, window_bounds = array<i64: 1, 32>}, {pipeline_mode = #tpu.pipeline_mode<synchronous>, transform_indices = @transform_8, window_bounds = array<i64: 1, 1>}, {transform_indices = @transform_9, window_bounds = array<i64: 8, 1>}]} {
    %c0 = arith.constant 0 : index
    %c0_0 = arith.constant 0 : index
    %0 = vector.load %arg1[%c0, %c0_0] : memref<8x16xf32, #tpu.memory_space<vmem>>, vector<8x16xf32>
    %c0_1 = arith.constant 0 : index
    %c0_2 = arith.constant 0 : index
    %1 = vector.load %arg3[%c0_1, %c0_2] : memref<16x32xf32, #tpu.memory_space<vmem>>, vector<16x32xf32>
    %cst = arith.constant dense<0.000000e+00> : vector<8x32xf32>
    %2 = tpu.matmul %0, %1, %cst {dimension_numbers = #tpu.dot_dimension_numbers<[1], [0], [0], [1], [0, 0, 1, 1], [], []>} : vector<8x16xf32>, vector<16x32xf32>, vector<8x32xf32> -> vector<8x32xf32>
    %c0_3 = arith.constant 0 : index
    %c0_4 = arith.constant 0 : index
    %3 = vector.load %arg2[%c0_3, %c0_4] : memref<8x16xf32, #tpu.memory_space<vmem>>, vector<8x16xf32>
    %c0_5 = arith.constant 0 : index
    %c0_6 = arith.constant 0 : index
    %4 = vector.load %arg4[%c0_5, %c0_6] : memref<16x32xf32, #tpu.memory_space<vmem>>, vector<16x32xf32>
    %cst_7 = arith.constant dense<0.000000e+00> : vector<8x32xf32>
    %5 = tpu.matmul %3, %4, %cst_7 {dimension_numbers = #tpu.dot_dimension_numbers<[1], [0], [0], [1], [0, 0, 1, 1], [], []>} : vector<8x16xf32>, vector<16x32xf32>, vector<8x32xf32> -> vector<8x32xf32>
    %6 = arith.addf %2, %5 : vector<8x32xf32>
    %c0_8 = arith.constant 0 : index
    %c0_9 = arith.constant 0 : index
    %7 = vector.load %arg5[%c0_8, %c0_9] : memref<1x32xf32, #tpu.memory_space<vmem>>, vector<1x32xf32>
    %8 = vector.broadcast %7 : vector<1x32xf32> to vector<8x32xf32>
    %9 = arith.addf %6, %8 : vector<8x32xf32>
    %10 = math.tanh %9 : vector<8x32xf32>
    %c0_10 = arith.constant 0 : index
    %c0_11 = arith.constant 0 : index
    %11 = vector.load %arg6[%c0_10, %c0_11] : memref<32x32xf32, #tpu.memory_space<vmem>>, vector<32x32xf32>
    %cst_12 = arith.constant dense<0.000000e+00> : vector<8x32xf32>
    %12 = tpu.matmul %10, %11, %cst_12 {dimension_numbers = #tpu.dot_dimension_numbers<[1], [0], [0], [1], [0, 0, 1, 1], [], []>} : vector<8x32xf32>, vector<32x32xf32>, vector<8x32xf32> -> vector<8x32xf32>
    %c0_13 = arith.constant 0 : index
    %c0_14 = arith.constant 0 : index
    %13 = vector.load %arg7[%c0_13, %c0_14] : memref<1x32xf32, #tpu.memory_space<vmem>>, vector<1x32xf32>
    %14 = vector.broadcast %13 : vector<1x32xf32> to vector<8x32xf32>
    %15 = arith.addf %12, %14 : vector<8x32xf32>
    %16 = math.tanh %15 : vector<8x32xf32>
    %c0_15 = arith.constant 0 : index
    %c0_16 = arith.constant 0 : index
    %17 = vector.load %arg8[%c0_15, %c0_16] : memref<1x32xf32, #tpu.memory_space<vmem>>, vector<1x32xf32>
    %18 = vector.broadcast %17 : vector<1x32xf32> to vector<8x32xf32>
    %19 = arith.mulf %16, %18 : vector<8x32xf32>
    %cst_17 = arith.constant dense<0.000000e+00> : vector<8xf32>
    %20 = vector.multi_reduction <add>, %19, %cst_17 [1] : vector<8x32xf32> to vector<8xf32>
    %21 = vector.shape_cast %20 : vector<8xf32> to vector<8x1xf32>
    %c0_18 = arith.constant 0 : index
    %c0_19 = arith.constant 0 : index
    %22 = vector.load %arg9[%c0_18, %c0_19] : memref<1x1xf32, #tpu.memory_space<vmem>>, vector<1x1xf32>
    %23 = vector.broadcast %22 : vector<1x1xf32> to vector<8x1xf32>
    %24 = arith.addf %21, %23 : vector<8x1xf32>
    %c0_20 = arith.constant 0 : index
    %c0_21 = arith.constant 0 : index
    %25 = vector.load %arg10[%c0_20, %c0_21] : memref<8x1xf32, #tpu.memory_space<vmem>>, vector<8x1xf32>
    tpu.vector_store %arg10[%c0_20, %c0_21], %24 {strides = array<i32>} : memref<8x1xf32, #tpu.memory_space<vmem>>, vector<8x1xf32>,
    return
  }
  func.func @transform_0(%arg0: i32) -> (i32, i32) {
    %c0_i32 = arith.constant 0 : i32
    %c0_i32_0 = arith.constant 0 : i32
    return %arg0, %c0_i32 : i32, i32
  }
  func.func @transform_1(%arg0: i32) -> (i32, i32) {
    %c0_i32 = arith.constant 0 : i32
    %c0_i32_0 = arith.constant 0 : i32
    return %arg0, %c0_i32 : i32, i32
  }
  func.func @transform_2(%arg0: i32) -> (i32, i32) {
    %c0_i32 = arith.constant 0 : i32
    %c0_i32_0 = arith.constant 0 : i32
    %c0_i32_1 = arith.constant 0 : i32
    return %c0_i32, %c0_i32_0 : i32, i32
  }
  func.func @transform_3(%arg0: i32) -> (i32, i32) {
    %c0_i32 = arith.constant 0 : i32
    %c0_i32_0 = arith.constant 0 : i32
    %c0_i32_1 = arith.constant 0 : i32
    return %c0_i32, %c0_i32_0 : i32, i32
  }
  func.func @transform_4(%arg0: i32) -> (i32, i32) {
    %c0_i32 = arith.constant 0 : i32
    %c0_i32_0 = arith.constant 0 : i32
    %c0_i32_1 = arith.constant 0 : i32
    return %c0_i32, %c0_i32_0 : i32, i32
  }
  func.func @transform_5(%arg0: i32) -> (i32, i32) {
    %c0_i32 = arith.constant 0 : i32
    %c0_i32_0 = arith.constant 0 : i32
    %c0_i32_1 = arith.constant 0 : i32
    return %c0_i32, %c0_i32_0 : i32, i32
  }
  func.func @transform_6(%arg0: i32) -> (i32, i32) {
    %c0_i32 = arith.constant 0 : i32
    %c0_i32_0 = arith.constant 0 : i32
    %c0_i32_1 = arith.constant 0 : i32
    return %c0_i32, %c0_i32_0 : i32, i32
  }
  func.func @transform_7(%arg0: i32) -> (i32, i32) {
    %c0_i32 = arith.constant 0 : i32
    %c0_i32_0 = arith.constant 0 : i32
    %c0_i32_1 = arith.constant 0 : i32
    return %c0_i32, %c0_i32_0 : i32, i32
  }
  func.func @transform_8(%arg0: i32) -> (i32, i32) {
    %c0_i32 = arith.constant 0 : i32
    %c0_i32_0 = arith.constant 0 : i32
    %c0_i32_1 = arith.constant 0 : i32
    return %c0_i32, %c0_i32_0 : i32, i32
  }
  func.func @transform_9(%arg0: i32) -> (i32, i32) {
    %c0_i32 = arith.constant 0 : i32
    %c0_i32_0 = arith.constant 0 : i32
    return %arg0, %c0_i32 : i32, i32
  }
}

</mosaic_0001>

<llo_original>
// kernel: tpu_custom_call.1
$region0: #{tpu_custom_call.1}
  #allocation0 [shape = 'u32[]', space=smem, size = 0x4, offset = 0x4, fixed_abs, tag = 'smem constant byte address 0x4 - core index']
  #allocation1 [shape = 'u32[72,128]{1,0:T(1,128)}', space=vmem, size = 0x9000, scoped, tag = 'internal scratch']
  #allocation2 [shape = 'f32[1,1]{1,0:T(1,128)S(1)}', space=vmem, size = 0x200, scoped, tag = 'scoped memory for tpu_custom_call.1']
  %s0 = inlined_call_operand.hbm [shape: f32[8,16], index: 0, kind: input, shape index: {}]
  %s1 = inlined_call_operand.hbm [shape: f32[8,16], index: 1, kind: input, shape index: {}]
  %s2 = inlined_call_operand.hbm [shape: f32[16,32], index: 2, kind: input, shape index: {}]
  %s3 = inlined_call_operand.hbm [shape: f32[16,32], index: 3, kind: input, shape index: {}]
  %s4 = inlined_call_operand.vmem [shape: f32[1,32], index: 4, kind: input, shape index: {}]
  %s5 = inlined_call_operand.hbm [shape: f32[32,32], index: 5, kind: input, shape index: {}]
  %s6 = inlined_call_operand.vmem [shape: f32[1,32], index: 6, kind: input, shape index: {}]
  %s7 = inlined_call_operand.vmem [shape: f32[1,32], index: 7, kind: input, shape index: {}]
  %s8 = inlined_call_operand.<no memory space> [shape: f32[1,1], index: 8, kind: input, shape index: {}]
  %s9 = inlined_call_operand.vmem [shape: f32[8,1], index: 9, kind: output, shape index: {}]
  %s10 = sld [smem:[#allocation0]]
  $region66: #{tpu_custom_call.1} parent=0
    _
  %s12 = ssub.s32 1, %s10
  %s13 = scalar_select 0, %s12, %s10
  %v14 = vstv %s8
  %15 = vst [vmem:[#allocation2] sm:$0x1] %v14
  $region1: #{tpu_custom_call.1} parent=0
    #allocation3 [shape = 'u8[4096]{0}', space=vmem, size = 0x1000, scoped, tag = 'input window, operand 0, single buffered']
    #allocation4 [shape = 's32[1]{0}', space=sflag, size = 0x4, scoped, tag = 'scoped memory for tpu_custom_call.1']
    #allocation5 [shape = 'u8[4096]{0}', space=vmem, size = 0x1000, scoped, tag = 'input window, operand 1, single buffered']
    #allocation6 [shape = 's32[1]{0}', space=sflag, size = 0x4, scoped, tag = 'scoped memory for tpu_custom_call.1']
    #allocation7 [shape = 'u8[8192]{0}', space=vmem, size = 0x2000, scoped, tag = 'input window, operand 2, single buffered']
    #allocation8 [shape = 'u8[8192]{0}', space=vmem, size = 0x2000, scoped, tag = 'input window, operand 3, single buffered']
    #allocation9 [shape = 's32[1]{0}', space=sflag, size = 0x4, scoped, tag = 'scoped memory for tpu_custom_call.1']
    #allocation10 [shape = 'u8[16384]{0}', space=vmem, size = 0x4000, scoped, tag = 'input window, operand 5, single buffered']
    %16 = vsyncpa [#allocation4], 0
    %17 = vsyncpa [#allocation6], 0
    %18 = vsyncpa [#allocation9], 0
    // Predicated region
    $region2: #{tpu_custom_call.1} parent=1 // pred_check
      _
    $region3: #{tpu_custom_call.1} parent=1 // pred_check_branch
      %20 = sbr.rel (0) target = $region5
    $region4: #{tpu_custom_call.1} parent=1 // pred_region
      %22 = vsyncadd [#allocation4], 0
      %s24 = sshll.u32 %s0, 4
      %s25 = int_to_ptr.hbm [resolvable:$true] %s24
      %s26 = sshll.u32 [#allocation3], 4
      %s27 = int_to_ptr.vmem [resolvable:$true] %s26
      %29 = dma.hbm_to_vmem [thread:$0]  %s25, 128, %s27, [#allocation4]
    $region5: #{tpu_custom_call.1} parent=1 // pred_fallthru
      _
    // Predicated region
    $region6: #{tpu_custom_call.1} parent=1 // pred_check
      _
    $region7: #{tpu_custom_call.1} parent=1 // pred_check_branch
      %31 = sbr.rel (0) target = $region9
    $region8: #{tpu_custom_call.1} parent=1 // pred_region
      %33 = vsyncadd [#allocation6], 0
      %s35 = sshll.u32 %s1, 4
      %s36 = int_to_ptr.hbm [resolvable:$true] %s35
      %s37 = sshll.u32 [#allocation5], 4
      %s38 = int_to_ptr.vmem [resolvable:$true] %s37
      %40 = dma.hbm_to_vmem [thread:$0]  %s36, 128, %s38, [#allocation6]
    $region9: #{tpu_custom_call.1} parent=1 // pred_fallthru
      _
    // Predicated region
    $region10: #{tpu_custom_call.1} parent=1 // pred_check
      _
    $region11: #{tpu_custom_call.1} parent=1 // pred_check_branch
      %42 = sbr.rel (0) target = $region13
    $region12: #{tpu_custom_call.1} parent=1 // pred_region
      %44 = vsyncadd [#allocation6], 0
      %s45 = sshll.u32 %s2, 4
      %s46 = int_to_ptr.hbm [resolvable:$true] %s45
      %s47 = sshll.u32 [#allocation7], 4
      %s48 = int_to_ptr.vmem [resolvable:$true] %s47
      %53 = dma.hbm_to_vmem [thread:$0]  %s46, 256, %s48, [#allocation6], 128, 128, 8
    $region13: #{tpu_custom_call.1} parent=1 // pred_fallthru
      _
    // Predicated region
    $region14: #{tpu_custom_call.1} parent=1 // pred_check
      _
    $region15: #{tpu_custom_call.1} parent=1 // pred_check_branch
      %55 = sbr.rel (0) target = $region17
    $region16: #{tpu_custom_call.1} parent=1 // pred_region
      %57 = vsyncadd [#allocation9], 0
      %s58 = sshll.u32 %s3, 4
      %s59 = int_to_ptr.hbm [resolvable:$true] %s58
      %s60 = sshll.u32 [#allocation8], 4
      %s61 = int_to_ptr.vmem [resolvable:$true] %s60
      %66 = dma.hbm_to_vmem [thread:$0]  %s59, 256, %s61, [#allocation9], 128, 128, 8
    $region17: #{tpu_custom_call.1} parent=1 // pred_fallthru
      _
    // Predicated region
    $region18: #{tpu_custom_call.1} parent=1 // pred_check
      _
    $region19: #{tpu_custom_call.1} parent=1 // pred_check_branch
      %68 = sbr.rel (0) target = $region21
    $region20: #{tpu_custom_call.1} parent=1 // pred_region
      _
    $region21: #{tpu_custom_call.1} parent=1 // pred_fallthru
      _
    // Predicated region
    $region22: #{tpu_custom_call.1} parent=1 // pred_check
      _
    $region23: #{tpu_custom_call.1} parent=1 // pred_check_branch
      %70 = sbr.rel (0) target = $region25
    $region24: #{tpu_custom_call.1} parent=1 // pred_region
      %72 = vsyncadd [#allocation9], 0
      %s73 = sshll.u32 %s5, 4
      %s74 = int_to_ptr.hbm [resolvable:$true] %s73
      %s75 = sshll.u32 [#allocation10], 4
      %s76 = int_to_ptr.vmem [resolvable:$true] %s75
      %81 = dma.hbm_to_vmem [thread:$0]  %s74, 512, %s76, [#allocation9], 128, 128, 8
    $region25: #{tpu_custom_call.1} parent=1 // pred_fallthru
      _
    // Predicated region
    $region26: #{tpu_custom_call.1} parent=1 // pred_check
      _
    $region27: #{tpu_custom_call.1} parent=1 // pred_check_branch
      %83 = sbr.rel (0) target = $region29
    $region28: #{tpu_custom_call.1} parent=1 // pred_region
      _
    $region29: #{tpu_custom_call.1} parent=1 // pred_fallthru
      _
    // Predicated region
    $region30: #{tpu_custom_call.1} parent=1 // pred_check
      _
    $region31: #{tpu_custom_call.1} parent=1 // pred_check_branch
      %85 = sbr.rel (0) target = $region33
    $region32: #{tpu_custom_call.1} parent=1 // pred_region
      _
    $region33: #{tpu_custom_call.1} parent=1 // pred_fallthru
      _
    // Predicated region
    $region34: #{tpu_custom_call.1} parent=1 // pred_check
      _
    $region35: #{tpu_custom_call.1} parent=1 // pred_check_branch
      %87 = sbr.rel (0) target = $region37
    $region36: #{tpu_custom_call.1} parent=1 // pred_region
      _
    $region37: #{tpu_custom_call.1} parent=1 // pred_fallthru
      _
    // Predicated region
    $region38: #{tpu_custom_call.1} parent=1 // pred_check
      _
    $region39: #{tpu_custom_call.1} parent=1 // pred_check_branch
      %89 = sbr.rel (0) target = $region41
    $region40: #{tpu_custom_call.1} parent=1 // pred_region
      %91 = dma.done [#allocation4], 128
    $region41: #{tpu_custom_call.1} parent=1 // pred_fallthru
      _
    // Predicated region
    $region42: #{tpu_custom_call.1} parent=1 // pred_check
      _
    $region43: #{tpu_custom_call.1} parent=1 // pred_check_branch
      %93 = sbr.rel (0) target = $region45
    $region44: #{tpu_custom_call.1} parent=1 // pred_region
      %95 = dma.done [#allocation6], 128
    $region45: #{tpu_custom_call.1} parent=1 // pred_fallthru
      _
    // Predicated region
    $region46: #{tpu_custom_call.1} parent=1 // pred_check
      _
    $region47: #{tpu_custom_call.1} parent=1 // pred_check_branch
      %97 = sbr.rel (0) target = $region49
    $region48: #{tpu_custom_call.1} parent=1 // pred_region
      %99 = dma.done [#allocation6], 256
    $region49: #{tpu_custom_call.1} parent=1 // pred_fallthru
      _
    // Predicated region
    $region50: #{tpu_custom_call.1} parent=1 // pred_check
      _
    $region51: #{tpu_custom_call.1} parent=1 // pred_check_branch
      %101 = sbr.rel (0) target = $region53
    $region52: #{tpu_custom_call.1} parent=1 // pred_region
      %103 = dma.done [#allocation9], 256
    $region53: #{tpu_custom_call.1} parent=1 // pred_fallthru
      _
    // Predicated region
    $region54: #{tpu_custom_call.1} parent=1 // pred_check
      _
    $region55: #{tpu_custom_call.1} parent=1 // pred_check_branch
      %105 = sbr.rel (0) target = $region57
    $region56: #{tpu_custom_call.1} parent=1 // pred_region
      %107 = dma.done [#allocation9], 512
    $region57: #{tpu_custom_call.1} parent=1 // pred_fallthru
      _
    %v108 = vld [vmem:[#allocation3] sm:$0xff]
    %v109 = vld [vmem:[#allocation7] sm:$0xff]
    %v110 = vld [vmem:[#allocation7 + $0x8] sm:$0xff]
    %v111 = vld [vmem:[#allocation5] sm:$0xff]
    %v112 = vld [vmem:[#allocation8] sm:$0xff]
    %v113 = vld [vmem:[#allocation8 + $0x8] sm:$0xff]
    %vm114 = vcmask 130048
    %v116 = vsel %vm114, %v111, 0
    %118 = vmatpush.msra.mxu0 0.0
    %119 = vmatpush.msra.mxu0 0.0
    %120 = vmatpush.msra.mxu0 0.0
    %121 = vmatpush.msra.mxu0 0.0
    %122 = vmatpush.msra.mxu0 0.0
    %123 = vmatpush.msra.mxu0 0.0
    %124 = vmatpush.msra.mxu0 0.0
    %125 = vmatpush.msra.mxu0 0.0
    %126 = vmatpush.msra.mxu0 0.0
    %127 = vmatpush.msra.mxu0 0.0
    %128 = vmatpush.msra.mxu0 0.0
    %129 = vmatpush.msra.mxu0 0.0
    %130 = vmatpush.msra.mxu0 0.0
    %131 = vmatpush.msra.mxu0 0.0
    %132 = vmatpush.msra.mxu0 %v113
    %133 = vmatpush.msra.mxu0 %v112
    %134 = vmatmul.f32.gmra.mxu0 %v116
    %v135 = vpop.f32.mrf.mxu0
    %v136 = vadd.f32 0.0, %v135
    %137 = vdwg.mxu0
    %v139 = vsel %vm114, %v108, 0
    %141 = vmatpush.msra.mxu0 0.0
    %142 = vmatpush.msra.mxu0 0.0
    %143 = vmatpush.msra.mxu0 0.0
    %144 = vmatpush.msra.mxu0 0.0
    %145 = vmatpush.msra.mxu0 0.0
    %146 = vmatpush.msra.mxu0 0.0
    %147 = vmatpush.msra.mxu0 0.0
    %148 = vmatpush.msra.mxu0 0.0
    %149 = vmatpush.msra.mxu0 0.0
    %150 = vmatpush.msra.mxu0 0.0
    %151 = vmatpush.msra.mxu0 0.0
    %152 = vmatpush.msra.mxu0 0.0
    %153 = vmatpush.msra.mxu0 0.0
    %154 = vmatpush.msra.mxu0 0.0
    %155 = vmatpush.msra.mxu0 %v110
    %156 = vmatpush.msra.mxu0 %v109
    %157 = vmatmul.f32.gmra.mxu0 %v139
    %v158 = vpop.f32.mrf.mxu0
    %v159 = vadd.f32 %v136, %v158
    %160 = vdwg.mxu0
    %v161 = vld [vmem:[%s4] sm:$0x1]
    %v163 = vperm.slane %v161, 0
    %v165 = vadd.f32 %v159, %v163
    %v166 = vtanh.pop %v165
    %v167 = vld [vmem:[#allocation10] sm:$0xff]
    %v168 = vld [vmem:[#allocation10 + $0x8] sm:$0xff]
    %v169 = vld [vmem:[#allocation10 + $0x10] sm:$0xff]
    %v170 = vld [vmem:[#allocation10 + $0x18] sm:$0xff]
    %v171 = vld [vmem:[%s6] sm:$0x1]
    %v173 = vperm.slane %v171, 0
    %vm175 = vcmask 261120
    %v177 = vsel %vm175, %v166, 0
    %179 = vmatpush.msra.mxu0 0.0
    %180 = vmatpush.msra.mxu0 0.0
    %181 = vmatpush.msra.mxu0 0.0
    %182 = vmatpush.msra.mxu0 0.0
    %183 = vmatpush.msra.mxu0 0.0
    %184 = vmatpush.msra.mxu0 0.0
    %185 = vmatpush.msra.mxu0 0.0
    %186 = vmatpush.msra.mxu0 0.0
    %187 = vmatpush.msra.mxu0 0.0
    %188 = vmatpush.msra.mxu0 0.0
    %189 = vmatpush.msra.mxu0 0.0
    %190 = vmatpush.msra.mxu0 0.0
    %191 = vmatpush.msra.mxu0 %v170
    %192 = vmatpush.msra.mxu0 %v169
    %193 = vmatpush.msra.mxu0 %v168
    %194 = vmatpush.msra.mxu0 %v167
    %195 = vmatmul.f32.gmra.mxu0 %v177
    %v196 = vpop.f32.mrf.mxu0
    %v197 = vadd.f32 %v173, %v196
    %198 = vdwg.mxu0
    %v199 = vtanh.pop %v197
    %v200 = vld [vmem:[%s7] sm:$0x1]
    %v202 = vperm.slane %v200, 0
    %v204 = vmul.f32 %v199, %v202
    %v205 = vsel %vm175, %v204, 0.0
    %206 = vadd.xlane.f32.xlu0 %v205
    %v207 = vpop.xlane.xlu0 %206
    %v208 = vld [vmem:[#allocation2] sm:$0x1]
    %v210 = vperm.slane %v208, 0
    %v212 = vadd.f32 %v207, %v210
    %vm213 = vcmask 7168
    %214 = vst.msk [vmem:[%s9] sm:$0xff] %vm213, %v212
    // Predicated region
    $region58: #{tpu_custom_call.1} parent=1 // pred_check
      _
    $region59: #{tpu_custom_call.1} parent=1 // pred_check_branch
      %216 = sbr.rel (0) target = $region61
    $region60: #{tpu_custom_call.1} parent=1 // pred_region
      _
    $region61: #{tpu_custom_call.1} parent=1 // pred_fallthru
      _
    // Predicated region
    $region62: #{tpu_custom_call.1} parent=1 // pred_check
      _
    $region63: #{tpu_custom_call.1} parent=1 // pred_check_branch
      %218 = sbr.rel (0) target = $region65
    $region64: #{tpu_custom_call.1} parent=1 // pred_region
      _
    $region65: #{tpu_custom_call.1} parent=1 // pred_fallthru
      _
    %219 = vsyncpa [#allocation4], 1
    %220 = vsyncpa [#allocation6], 1
    %221 = vsyncpa [#allocation9], 1

</llo_original>
